<compile_context>
chip_gen: v7x
topology: tpu7x:2x2x1
jax: 0.10.0
libtpu: 0.0.40
codegen_flags: <defaults>
</compile_context>

<pallas_src>
from functools import partial

import jax
import jax.numpy as jnp
import numpy as np
from jax.experimental import pallas as pl
from jax.experimental.pallas import tpu as pltpu


def _round_up(x: int, m: int) -> int:
    return ((x + m - 1) // m) * m


def _svdpp_kernel(p_ref, q_ref, bias_ref, out_ref):
    # p_ref, q_ref : (K, TB) in stream_dtype ; bias_ref, out_ref : (1, TB) f32
    p = p_ref[...].astype(jnp.float32)                       # upcast before math
    q = q_ref[...].astype(jnp.float32)
    dot = jnp.sum(p * q, axis=0, keepdims=True)              # sublane (XLU) reduce
    out_ref[...] = bias_ref[...] + dot                       # lane-dense store


@partial(jax.jit, static_argnames=("block_b", "stream_dtype"))
def svd_plus_plus_forward(u_idx, i_idx, *, bi, bu, qi, pu, Ru, U,
                          block_b=8192, stream_dtype=jnp.bfloat16):
    """Pallas-backed equivalent of SVD_plus_plus.forward(u, i).

    bi: (n_items,), bu: (n_users,), qi: (K, n_items), pu: (n_users, K),
    Ru: (n_users, 1), U: scalar global mean.  Returns (B,) ratings (f32).
    """
    B = int(u_idx.shape[0])
    K = int(qi.shape[0])

    # --- wrapper-side gathers in the lane-dense (K, B) / (1, B) layout ------
    q_g = jnp.take(qi, i_idx, axis=1)                            # (K, B)
    pu_t = jnp.transpose(pu)                                     # (K, n_users) once
    ru_g = jnp.take(Ru[:, 0], u_idx)[None, :]                    # (1, B)
    p_g = jnp.take(pu_t, u_idx, axis=1) + ru_g                   # (K, B) == (pu[u]+Ru[u]).T
    bias = (jnp.asarray(U, jnp.float32)
            + bi[i_idx] + bu[u_idx])[None, :].astype(jnp.float32)  # (1, B)
    p_g = p_g.astype(stream_dtype)
    q_g = q_g.astype(stream_dtype)

    # --- batch tile (lanes): big, VMEM-capped, >= 2 grid steps if possible --
    sb = int(np.dtype(stream_dtype).itemsize)
    # double-buffered pipelined footprint per lane: p + q streams, bias, out
    bytes_per_lane = 2 * (2 * K * sb + 4 + 4)
    vmem_budget = 12 * 1024 * 1024                  # < 16 MiB scoped default (v5e)
    tb_vmem = max(128, (vmem_budget // bytes_per_lane) // 128 * 128)
    tb_two = max(128, _round_up(pl.cdiv(B, 2), 128))  # >=2 steps -> v7x megacore
    TB = max(128, min(_round_up(int(block_b), 128), tb_vmem, tb_two))
    grid = (pl.cdiv(B, TB),)                         # ragged last block, no pad

    out = pl.pallas_call(
        _svdpp_kernel,
        out_shape=jax.ShapeDtypeStruct((1, B), jnp.float32),
        grid=grid,
        in_specs=[
            pl.BlockSpec((K, TB), lambda i: (0, i)),   # (pu[u] + Ru[u]).T
            pl.BlockSpec((K, TB), lambda i: (0, i)),   # qi[:, i]
            pl.BlockSpec((1, TB), lambda i: (0, i)),   # U + bi[i] + bu[u]
        ],
        out_specs=pl.BlockSpec((1, TB), lambda i: (0, i)),
        compiler_params=pltpu.CompilerParams(
            dimension_semantics=("parallel",),
        ),
    )(p_g, q_g, bias)

    return out[0]                                    # (B,) like the torch code


if __name__ == "__main__":
    # --- deterministic synthetic "dataset" / parameter init -----------------
    num_users, num_items, K, B = 32, 48, 32, 200     # B not a multiple of 128:
    U_mean = 3.5                                     # exercises the ragged block

    key = jax.random.PRNGKey(0)
    k_bi, k_bu, k_qi, k_pu, k_rated, k_u, k_i = jax.random.split(key, 7)

    # __init__ shapes: bi (n_items,), bu (n_users,), qi (K, n_items),
    # pu (n_users, K), Ru (n_users, 1).
    bi = 0.1 * jax.random.normal(k_bi, (num_items,), dtype=jnp.float32)
    bu = 0.1 * jax.random.normal(k_bu, (num_users,), dtype=jnp.float32)
    qi = U_mean + 0.05 * jax.random.normal(k_qi, (K, num_items), dtype=jnp.float32)
    pu = U_mean + 0.05 * jax.random.normal(k_pu, (num_users, K), dtype=jnp.float32)

    # Ru: binary rated/unrated history -> row-sum / sqrt(num_items), (n_users, 1)
    rated = (jax.random.uniform(k_rated, (num_users, num_items)) < 0.3).astype(jnp.float32)
    Ru = (jnp.sum(rated, axis=1, keepdims=True) / np.sqrt(num_items)).astype(jnp.float32)

    # batch of (user, item) indices
    u_idx = jax.random.randint(k_u, (B,), 0, num_users)
    i_idx = jax.random.randint(k_i, (B,), 0, num_items)

    # --- pure-JAX f32 reference (mirrors the torch forward exactly) ---------
    ref32 = (U_mean + bi[i_idx] + bu[u_idx]
             + jnp.sum((pu[u_idx] + Ru[u_idx]) * jnp.transpose(qi[:, i_idx]), axis=-1))

    # 1) exact f32 streaming path: matches the module's numerics
    r32 = svd_plus_plus_forward(u_idx, i_idx, bi=bi, bu=bu, qi=qi, pu=pu, Ru=Ru,
                                U=U_mean, stream_dtype=jnp.float32)
    r32 = jax.block_until_ready(r32)
    np.testing.assert_allclose(np.asarray(r32), np.asarray(ref32),
                               rtol=1e-5, atol=1e-4)

    # 2) default bf16-streamed path (f32 accumulation): compare against a
    #    reference that applies the same operand rounding, plus a loose check
    #    against the exact f32 reference.
    rbf = svd_plus_plus_forward(u_idx, i_idx, bi=bi, bu=bu, qi=qi, pu=pu, Ru=Ru,
                                U=U_mean)
    rbf = jax.block_until_ready(rbf)
    p_bf = (pu[u_idx] + Ru[u_idx]).astype(jnp.bfloat16).astype(jnp.float32)
    q_bf = jnp.transpose(qi[:, i_idx]).astype(jnp.bfloat16).astype(jnp.float32)
    refbf = U_mean + bi[i_idx] + bu[u_idx] + jnp.sum(p_bf * q_bf, axis=-1)
    np.testing.assert_allclose(np.asarray(rbf), np.asarray(refbf),
                               rtol=1e-5, atol=1e-4)
    np.testing.assert_allclose(np.asarray(rbf), np.asarray(ref32),
                               rtol=2e-2, atol=2e-2)

    print("KERNEL_OK")
</pallas_src>

<mosaic_0001>
module attributes {stable_mosaic.version = 11 : i64} {
  func.func @_svdpp_kernel(%arg0: i32, %arg1: memref<32x128xf32, #tpu.memory_space<vmem>>, %arg2: memref<32x128xf32, #tpu.memory_space<vmem>>, %arg3: memref<1x128xf32, #tpu.memory_space<vmem>>, %arg4: memref<1x128xf32, #tpu.memory_space<vmem>>) attributes {dimension_semantics = [#tpu.dimension_semantics<parallel>], iteration_bounds = array<i64: 2>, scalar_prefetch = 0 : i64, scratch_operands = 0 : i64, tpu.core_type = #tpu.core_type<tc>, window_params = [{transform_indices = @transform_0, window_bounds = array<i64: 32, 128>}, {transform_indices = @transform_1, window_bounds = array<i64: 32, 128>}, {transform_indices = @transform_2, window_bounds = array<i64: 1, 128>}, {transform_indices = @transform_3, window_bounds = array<i64: 1, 128>}]} {
    %c0 = arith.constant 0 : index
    %c0_0 = arith.constant 0 : index
    %0 = vector.load %arg1[%c0, %c0_0] : memref<32x128xf32, #tpu.memory_space<vmem>>, vector<32x128xf32>
    %c0_1 = arith.constant 0 : index
    %c0_2 = arith.constant 0 : index
    %1 = vector.load %arg2[%c0_1, %c0_2] : memref<32x128xf32, #tpu.memory_space<vmem>>, vector<32x128xf32>
    %2 = arith.mulf %0, %1 : vector<32x128xf32>
    %cst = arith.constant dense<0.000000e+00> : vector<128xf32>
    %3 = vector.multi_reduction <add>, %2, %cst [0] : vector<32x128xf32> to vector<128xf32>
    %4 = vector.shape_cast %3 : vector<128xf32> to vector<1x128xf32>
    %c0_3 = arith.constant 0 : index
    %c0_4 = arith.constant 0 : index
    %5 = vector.load %arg3[%c0_3, %c0_4] : memref<1x128xf32, #tpu.memory_space<vmem>>, vector<1x128xf32>
    %6 = arith.addf %5, %4 : vector<1x128xf32>
    %c0_5 = arith.constant 0 : index
    %c0_6 = arith.constant 0 : index
    %7 = vector.load %arg4[%c0_5, %c0_6] : memref<1x128xf32, #tpu.memory_space<vmem>>, vector<1x128xf32>
    tpu.vector_store %arg4[%c0_5, %c0_6], %6 {strides = array<i32>} : memref<1x128xf32, #tpu.memory_space<vmem>>, vector<1x128xf32>,
    return
  }
  func.func @transform_0(%arg0: i32) -> (i32, i32) {
    %c0_i32 = arith.constant 0 : i32
    %c0_i32_0 = arith.constant 0 : i32
    return %c0_i32, %arg0 : i32, i32
  }
  func.func @transform_1(%arg0: i32) -> (i32, i32) {
    %c0_i32 = arith.constant 0 : i32
    %c0_i32_0 = arith.constant 0 : i32
    return %c0_i32, %arg0 : i32, i32
  }
  func.func @transform_2(%arg0: i32) -> (i32, i32) {
    %c0_i32 = arith.constant 0 : i32
    %c0_i32_0 = arith.constant 0 : i32
    return %c0_i32, %arg0 : i32, i32
  }
  func.func @transform_3(%arg0: i32) -> (i32, i32) {
    %c0_i32 = arith.constant 0 : i32
    %c0_i32_0 = arith.constant 0 : i32
    return %c0_i32, %arg0 : i32, i32
  }
}

</mosaic_0001>

<llo_original>
// kernel: svd_plus_plus_forward.1
$region0: #{svd_plus_plus_forward.1}
  #allocation0 [shape = 'u32[]', space=smem, size = 0x4, offset = 0x4, fixed_abs, tag = 'smem constant byte address 0x4 - core index']
  #allocation1 [shape = 'u32[144,128]{1,0:T(1,128)}', space=vmem, size = 0x12000, scoped, tag = 'internal scratch']
  %s0 = inlined_call_operand.vmem [shape: f32[32,200], index: 0, kind: input, shape index: {}]
  %s1 = inlined_call_operand.vmem [shape: f32[32,200], index: 1, kind: input, shape index: {}]
  %s2 = inlined_call_operand.vmem [shape: f32[1,200], index: 2, kind: input, shape index: {}]
  %s3 = inlined_call_operand.hbm [shape: f32[1,200], index: 3, kind: output, shape index: {}]
  %s4 = sld [smem:[#allocation0]]
  $region121: #{svd_plus_plus_forward.1} parent=0
    _
  %s6 = ssub.s32 1, %s4
  %s7 = scalar_select 0, %s6, %s4
  $region1: #{svd_plus_plus_forward.1} parent=0
    #allocation2 [shape = 'u8[32768]{0}', space=vmem, size = 0x8000, scoped, tag = 'input window, operand 0']
    #allocation3 [shape = 'u8[32768]{0}', space=vmem, size = 0x8000, scoped, tag = 'input window, operand 1']
    #allocation4 [shape = 'u8[1024]{0}', space=vmem, size = 0x400, scoped, tag = 'output window, operand 0']
    #allocation5 [shape = 's32[2]{0}', space=sflag, size = 0x8, scoped, tag = 'scoped memory for svd_plus_plus_forward.1']
    %8 = vsyncpa [#allocation5], 0
    %s9 = scalar_lea.sflag [#allocation5], 1
    %10 = vsyncpa %s9, 0
    loop: start=0, step=1, limit=4
    $region2: #{svd_plus_plus_forward.1} parent=1 // loop_pre_header
      _
    $region3: #{svd_plus_plus_forward.1} parent=1 // loop_header
      %s12 = sphi 0, %s16
      %p13 = scmp.ge.s32.totalorder %s12, 4
      %s22 = sphi 0, %s24
      %s25 = sphi 0, %s22
      %s26 = sphi 0, %s25
      %s42 = sphi 0, %s26
      %s48 = sphi 0, %s50
      %s51 = sphi 0, %s48
      %s52 = sphi 0, %s51
      %s68 = sphi 0, %s52
      %s74 = sphi 0, %s76
      %s77 = sphi 0, %s74
      %s78 = sphi 0, %s77
      %s94 = sphi 0, %s78
      %s100 = sphi 0, %s102
      %s103 = sphi 0, %s100
      %s104 = sphi 0, %s103
      %s120 = sphi 0, %s104
    $region4: #{svd_plus_plus_forward.1} parent=1 // loop_header_branch
      %15 = sbr.rel (%p13) target = $region8
    $region5: #{svd_plus_plus_forward.1} parent=1 // loop_body
      %s17 = ssub.s32 %s12, 1
      %s18 = ssub.s32 %s12, 2
      %s19 = sadd.s32 %s12, 1
      %s20 = ssub.s32 %s12, %s19
      %p21 = scmp.eq.s32.totalorder %s20, 0
      %s23 = sadd.s32 %s22, 1
      %s24 = scalar_select %p21, %s22, %s23
      %p27 = pneg %p21
      %p28 = scmp.eq.s32.totalorder %s12, 1
      %p29 = por %p27, %p28
      %p30 = scmp.ne.s32.totalorder %s22, %s25
      %p31 = scmp.eq.s32.totalorder %s12, 0
      %p32 = por %p30, %p31
      %p33 = scmp.ne.s32.totalorder %s22, %s25
      %p34 = scmp.eq.s32.totalorder %s17, 1
      %p35 = por %p33, %p34
      %p36 = scmp.ne.s32.totalorder %s25, %s26
      %p37 = scmp.eq.s32.totalorder %s17, 0
      %p38 = por %p36, %p37
      %p39 = scmp.ne.s32.totalorder %s25, %s26
      %p40 = scmp.eq.s32.totalorder %s18, 1
      %p41 = por %p39, %p40
      %p43 = scmp.ne.s32.totalorder %s26, %s42
      %p44 = scmp.eq.s32.totalorder %s18, 0
      %p45 = por %p43, %p44
      %s46 = ssub.s32 %s12, %s19
      %p47 = scmp.eq.s32.totalorder %s46, 0
      %s49 = sadd.s32 %s48, 1
      %s50 = scalar_select %p47, %s48, %s49
      %p53 = pneg %p47
      %p54 = scmp.eq.s32.totalorder %s12, 1
      %p55 = por %p53, %p54
      %p56 = scmp.ne.s32.totalorder %s48, %s51
      %p57 = scmp.eq.s32.totalorder %s12, 0
      %p58 = por %p56, %p57
      %p59 = scmp.ne.s32.totalorder %s48, %s51
      %p60 = scmp.eq.s32.totalorder %s17, 1
      %p61 = por %p59, %p60
      %p62 = scmp.ne.s32.totalorder %s51, %s52
      %p63 = scmp.eq.s32.totalorder %s17, 0
      %p64 = por %p62, %p63
      %p65 = scmp.ne.s32.totalorder %s51, %s52
      %p66 = scmp.eq.s32.totalorder %s18, 1
      %p67 = por %p65, %p66
      %p69 = scmp.ne.s32.totalorder %s52, %s68
      %p70 = scmp.eq.s32.totalorder %s18, 0
      %p71 = por %p69, %p70
      %s72 = ssub.s32 %s12, %s19
      %p73 = scmp.eq.s32.totalorder %s72, 0
      %s75 = sadd.s32 %s74, 1
      %s76 = scalar_select %p73, %s74, %s75
      %p79 = pneg %p73
      %p80 = scmp.eq.s32.totalorder %s12, 1
      %p81 = por %p79, %p80
      %p82 = scmp.ne.s32.totalorder %s74, %s77
      %p83 = scmp.eq.s32.totalorder %s12, 0
      %p84 = por %p82, %p83
      %p85 = scmp.ne.s32.totalorder %s74, %s77
      %p86 = scmp.eq.s32.totalorder %s17, 1
      %p87 = por %p85, %p86
      %p88 = scmp.ne.s32.totalorder %s77, %s78
      %p89 = scmp.eq.s32.totalorder %s17, 0
      %p90 = por %p88, %p89
      %p91 = scmp.ne.s32.totalorder %s77, %s78
      %p92 = scmp.eq.s32.totalorder %s18, 1
      %p93 = por %p91, %p92
      %p95 = scmp.ne.s32.totalorder %s78, %s94
      %p96 = scmp.eq.s32.totalorder %s18, 0
      %p97 = por %p95, %p96
      %s98 = ssub.s32 %s12, %s19
      %p99 = scmp.eq.s32.totalorder %s98, 0
      %s101 = sadd.s32 %s100, 1
      %s102 = scalar_select %p99, %s100, %s101
      %p105 = pneg %p99
      %p106 = scmp.eq.s32.totalorder %s12, 1
      %p107 = por %p105, %p106
      %p108 = scmp.ne.s32.totalorder %s100, %s103
      %p109 = scmp.eq.s32.totalorder %s12, 0
      %p110 = por %p108, %p109
      %p111 = scmp.ne.s32.totalorder %s100, %s103
      %p112 = scmp.eq.s32.totalorder %s17, 1
      %p113 = por %p111, %p112
      %p114 = scmp.ne.s32.totalorder %s103, %s104
      %p115 = scmp.eq.s32.totalorder %s17, 0
      %p116 = por %p114, %p115
      %p117 = scmp.ne.s32.totalorder %s103, %s104
      %p118 = scmp.eq.s32.totalorder %s18, 1
      %p119 = por %p117, %p118
      %p121 = scmp.ne.s32.totalorder %s104, %s120
      %p122 = scmp.eq.s32.totalorder %s18, 0
      %p123 = por %p121, %p122
      %p124 = scmp.le.s32.totalorder 1, %s12
      %p125 = scmp.lt.s32.totalorder %s12, 3
      %p126 = pnand %p124, %p125
      %p127 = pneg %p126
      // Predicated region
      $region9: #{svd_plus_plus_forward.1} parent=5 // pred_check
        _
      $region10: #{svd_plus_plus_forward.1} parent=5 // pred_check_branch
        %129 = sbr.rel (%p126) target = $region12
      $region11: #{svd_plus_plus_forward.1} parent=5 // pred_region
        %s130 = ssub.s32 %s12, 1
      $region12: #{svd_plus_plus_forward.1} parent=5 // pred_fallthru
        _
      %p131 = scmp.lt.s32.totalorder %s12, 2
      // Predicated region
      $region13: #{svd_plus_plus_forward.1} parent=5 // pred_check
        %p132 = pneg %p131
      $region14: #{svd_plus_plus_forward.1} parent=5 // pred_check_branch
        %134 = sbr.rel (%p132) target = $region16
      $region15: #{svd_plus_plus_forward.1} parent=5 // pred_region
        // Predicated region
        $region17: #{svd_plus_plus_forward.1} parent=15 // pred_check
          %p135 = pneg %p32
        $region18: #{svd_plus_plus_forward.1} parent=15 // pred_check_branch
          %137 = sbr.rel (%p135) target = $region20
        $region19: #{svd_plus_plus_forward.1} parent=15 // pred_region
          %s138 = sand.u32 %s22, 1
          %s139 = sand.u32 %s22, 1
          %s140 = smul.addr %s139, 32
          %s141 = scalar_lea.vmem [#allocation2], %s140
          %s142 = smul.addr %s12, 8
          %s143 = scalar_lea.vmem %s0, %s142
          // Predicated region
          $region21: #{svd_plus_plus_forward.1} parent=19 // pred_check
            _
          $region22: #{svd_plus_plus_forward.1} parent=19 // pred_check_branch
            %145 = sbr.rel (0) target = $region24
          $region23: #{svd_plus_plus_forward.1} parent=19 // pred_region
            // Predicated region
            $region25: #{svd_plus_plus_forward.1} parent=23 // pred_check
              _
            $region26: #{svd_plus_plus_forward.1} parent=23 // pred_check_branch
              %147 = sbr.rel (0) target = $region28
            $region27: #{svd_plus_plus_forward.1} parent=23 // pred_region
              // Predicated region
              $region40: #{svd_plus_plus_forward.1} parent=27 // pred_check
                _
              $region41: #{svd_plus_plus_forward.1} parent=27 // pred_check_branch
                %168 = sbr.rel (0) target = $region43
              $region42: #{svd_plus_plus_forward.1} parent=27 // pred_region
                loop: start=0, step=1, limit=1
                $region44: #{svd_plus_plus_forward.1} parent=42 // loop_pre_header
                  _
                $region45: #{svd_plus_plus_forward.1} parent=42 // loop_header
                  %s170 = sphi 0, %s174
                  %p171 = scmp.ge.s32.totalorder %s170, 1
                  %s175 = sphi %s143, %s143
                  %s176 = sphi %s141, %s141
                $region46: #{svd_plus_plus_forward.1} parent=42 // loop_header_branch
                  %173 = sbr.rel (%p171) target = $region50
                $region47: #{svd_plus_plus_forward.1} parent=42 // loop_body
                  %v177 = vld [vmem:[%s175] sm:$0xff]
                  %178 = vst [vmem:[%s176] sm:$0xff] %v177
                  %v179 = vld [vmem:[%s175 + $0x10] sm:$0xff]
                  %180 = vst [vmem:[%s176 + $0x8] sm:$0xff] %v179
                  %v181 = vld [vmem:[%s175 + $0x20] sm:$0xff]
                  %182 = vst [vmem:[%s176 + $0x10] sm:$0xff] %v181
                  %v183 = vld [vmem:[%s175 + $0x30] sm:$0xff]
                  %184 = vst [vmem:[%s176 + $0x18] sm:$0xff] %v183
                $region48: #{svd_plus_plus_forward.1} parent=42 // loop_footer
                  %s174 = sadd.s32 1, %s170
                $region49: #{svd_plus_plus_forward.1} parent=42 // loop_footer_branch
                  %169 = sbr.rel target = $region45
                $region50: #{svd_plus_plus_forward.1} parent=42 // loop_exit
                  _
              $region43: #{svd_plus_plus_forward.1} parent=27 // pred_fallthru
                _
              // Predicated region
              $region51: #{svd_plus_plus_forward.1} parent=27 // pred_check
                _
              $region52: #{svd_plus_plus_forward.1} parent=27 // pred_check_branch
                %186 = sbr.rel target = $region54
              $region53: #{svd_plus_plus_forward.1} parent=27 // pred_region
                _
              $region54: #{svd_plus_plus_forward.1} parent=27 // pred_fallthru
                _
            $region28: #{svd_plus_plus_forward.1} parent=23 // pred_fallthru
              _
            // Predicated region
            $region29: #{svd_plus_plus_forward.1} parent=23 // pred_check
              _
            $region30: #{svd_plus_plus_forward.1} parent=23 // pred_check_branch
              %149 = sbr.rel target = $region32
            $region31: #{svd_plus_plus_forward.1} parent=23 // pred_region
              loop: start=0, step=1, limit=1
              $region33: #{svd_plus_plus_forward.1} parent=31 // loop_pre_header
                _
              $region34: #{svd_plus_plus_forward.1} parent=31 // loop_header
                %s152 = sphi 0, %s156
                %p153 = scmp.ge.s32.totalorder %s152, 1
                %s157 = sphi %s143, %s143
                %s158 = sphi %s141, %s141
              $region35: #{svd_plus_plus_forward.1} parent=31 // loop_header_branch
                %155 = sbr.rel (%p153) target = $region39
              $region36: #{svd_plus_plus_forward.1} parent=31 // loop_body
                %v159 = vld [vmem:[%s157] sm:$0xff]
                %160 = vst [vmem:[%s158] sm:$0xff] %v159
                %v161 = vld [vmem:[%s157 + $0x10] sm:$0xff]
                %162 = vst [vmem:[%s158 + $0x8] sm:$0xff] %v161
                %v163 = vld [vmem:[%s157 + $0x20] sm:$0xff]
                %164 = vst [vmem:[%s158 + $0x10] sm:$0xff] %v163
                %v165 = vld [vmem:[%s157 + $0x30] sm:$0xff]
                %166 = vst [vmem:[%s158 + $0x18] sm:$0xff] %v165
              $region37: #{svd_plus_plus_forward.1} parent=31 // loop_footer
                %s156 = sadd.s32 1, %s152
              $region38: #{svd_plus_plus_forward.1} parent=31 // loop_footer_branch
                %151 = sbr.rel target = $region34
              $region39: #{svd_plus_plus_forward.1} parent=31 // loop_exit
                _
            $region32: #{svd_plus_plus_forward.1} parent=23 // pred_fallthru
              _
          $region24: #{svd_plus_plus_forward.1} parent=19 // pred_fallthru
            _
          %187 = vnop
        $region20: #{svd_plus_plus_forward.1} parent=15 // pred_fallthru
          _
        // Predicated region
        $region55: #{svd_plus_plus_forward.1} parent=15 // pred_check
          %p188 = pneg %p58
        $region56: #{svd_plus_plus_forward.1} parent=15 // pred_check_branch
          %190 = sbr.rel (%p188) target = $region58
        $region57: #{svd_plus_plus_forward.1} parent=15 // pred_region
          %s191 = sand.u32 %s48, 1
          %s192 = sand.u32 %s48, 1
          %s193 = smul.addr %s192, 32
          %s194 = scalar_lea.vmem [#allocation3], %s193
          %s195 = smul.addr %s12, 8
          %s196 = scalar_lea.vmem %s1, %s195
          // Predicated region
          $region59: #{svd_plus_plus_forward.1} parent=57 // pred_check
            _
          $region60: #{svd_plus_plus_forward.1} parent=57 // pred_check_branch
            %198 = sbr.rel (0) target = $region62
          $region61: #{svd_plus_plus_forward.1} parent=57 // pred_region
            // Predicated region
            $region63: #{svd_plus_plus_forward.1} parent=61 // pred_check
              _
            $region64: #{svd_plus_plus_forward.1} parent=61 // pred_check_branch
              %200 = sbr.rel (0) target = $region66
            $region65: #{svd_plus_plus_forward.1} parent=61 // pred_region
              // Predicated region
              $region78: #{svd_plus_plus_forward.1} parent=65 // pred_check
                _
              $region79: #{svd_plus_plus_forward.1} parent=65 // pred_check_branch
                %221 = sbr.rel (0) target = $region81
              $region80: #{svd_plus_plus_forward.1} parent=65 // pred_region
                loop: start=0, step=1, limit=1
                $region82: #{svd_plus_plus_forward.1} parent=80 // loop_pre_header
                  _
                $region83: #{svd_plus_plus_forward.1} parent=80 // loop_header
                  %s223 = sphi 0, %s227
                  %p224 = scmp.ge.s32.totalorder %s223, 1
                  %s228 = sphi %s196, %s196
                  %s229 = sphi %s194, %s194
                $region84: #{svd_plus_plus_forward.1} parent=80 // loop_header_branch
                  %226 = sbr.rel (%p224) target = $region88
                $region85: #{svd_plus_plus_forward.1} parent=80 // loop_body
                  %v230 = vld [vmem:[%s228] sm:$0xff]
                  %231 = vst [vmem:[%s229] sm:$0xff] %v230
                  %v232 = vld [vmem:[%s228 + $0x10] sm:$0xff]
                  %233 = vst [vmem:[%s229 + $0x8] sm:$0xff] %v232
                  %v234 = vld [vmem:[%s228 + $0x20] sm:$0xff]
                  %235 = vst [vmem:[%s229 + $0x10] sm:$0xff] %v234
                  %v236 = vld [vmem:[%s228 + $0x30] sm:$0xff]
                  %237 = vst [vmem:[%s229 + $0x18] sm:$0xff] %v236
                $region86: #{svd_plus_plus_forward.1} parent=80 // loop_footer
                  %s227 = sadd.s32 1, %s223
                $region87: #{svd_plus_plus_forward.1} parent=80 // loop_footer_branch
                  %222 = sbr.rel target = $region83
                $region88: #{svd_plus_plus_forward.1} parent=80 // loop_exit
                  _
              $region81: #{svd_plus_plus_forward.1} parent=65 // pred_fallthru
                _
              // Predicated region
              $region89: #{svd_plus_plus_forward.1} parent=65 // pred_check
                _
              $region90: #{svd_plus_plus_forward.1} parent=65 // pred_check_branch
                %239 = sbr.rel target = $region92
              $region91: #{svd_plus_plus_forward.1} parent=65 // pred_region
                _
              $region92: #{svd_plus_plus_forward.1} parent=65 // pred_fallthru
                _
            $region66: #{svd_plus_plus_forward.1} parent=61 // pred_fallthru
              _
            // Predicated region
            $region67: #{svd_plus_plus_forward.1} parent=61 // pred_check
              _
            $region68: #{svd_plus_plus_forward.1} parent=61 // pred_check_branch
              %202 = sbr.rel target = $region70
            $region69: #{svd_plus_plus_forward.1} parent=61 // pred_region
              loop: start=0, step=1, limit=1
              $region71: #{svd_plus_plus_forward.1} parent=69 // loop_pre_header
                _
              $region72: #{svd_plus_plus_forward.1} parent=69 // loop_header
                %s205 = sphi 0, %s209
                %p206 = scmp.ge.s32.totalorder %s205, 1
                %s210 = sphi %s196, %s196
                %s211 = sphi %s194, %s194
              $region73: #{svd_plus_plus_forward.1} parent=69 // loop_header_branch
                %208 = sbr.rel (%p206) target = $region77
              $region74: #{svd_plus_plus_forward.1} parent=69 // loop_body
                %v212 = vld [vmem:[%s210] sm:$0xff]
                %213 = vst [vmem:[%s211] sm:$0xff] %v212
                %v214 = vld [vmem:[%s210 + $0x10] sm:$0xff]
                %215 = vst [vmem:[%s211 + $0x8] sm:$0xff] %v214
                %v216 = vld [vmem:[%s210 + $0x20] sm:$0xff]
                %217 = vst [vmem:[%s211 + $0x10] sm:$0xff] %v216
                %v218 = vld [vmem:[%s210 + $0x30] sm:$0xff]
                %219 = vst [vmem:[%s211 + $0x18] sm:$0xff] %v218
              $region75: #{svd_plus_plus_forward.1} parent=69 // loop_footer
                %s209 = sadd.s32 1, %s205
              $region76: #{svd_plus_plus_forward.1} parent=69 // loop_footer_branch
                %204 = sbr.rel target = $region72
              $region77: #{svd_plus_plus_forward.1} parent=69 // loop_exit
                _
            $region70: #{svd_plus_plus_forward.1} parent=61 // pred_fallthru
              _
          $region62: #{svd_plus_plus_forward.1} parent=57 // pred_fallthru
            _
          %240 = vnop
        $region58: #{svd_plus_plus_forward.1} parent=15 // pred_fallthru
          _
        // Predicated region
        $region93: #{svd_plus_plus_forward.1} parent=15 // pred_check
          %p241 = pneg %p84
        $region94: #{svd_plus_plus_forward.1} parent=15 // pred_check_branch
          %243 = sbr.rel (%p241) target = $region96
        $region95: #{svd_plus_plus_forward.1} parent=15 // pred_region
          %p244 = scmp.lt.s32.totalorder %s12, 1
          %s245 = scalar_select %p244, %s12, 1
          %s246 = scalar_lea.vmem %s2, %s245
        $region96: #{svd_plus_plus_forward.1} parent=15 // pred_fallthru
          _
      $region16: #{svd_plus_plus_forward.1} parent=5 // pred_fallthru
        _
      %p247 = scmp.le.s32.totalorder 1, %s12
      %p248 = scmp.lt.s32.totalorder %s12, 3
      %p249 = pnand %p247, %p248
      %p250 = pneg %p249
      // Predicated region
      $region97: #{svd_plus_plus_forward.1} parent=5 // pred_check
        _
      $region98: #{svd_plus_plus_forward.1} parent=5 // pred_check_branch
        %252 = sbr.rel (%p249) target = $region100
      $region99: #{svd_plus_plus_forward.1} parent=5 // pred_region
        %s253 = ssub.s32 %s12, 1
        %s254 = sand.u32 %s25, 1
        %s255 = sand.u32 %s25, 1
        %s256 = smul.addr %s255, 32
        %s257 = scalar_lea.vmem [#allocation2], %s256
        // Predicated region
        $region101: #{svd_plus_plus_forward.1} parent=99 // pred_check
          %p258 = pneg %p38
        $region102: #{svd_plus_plus_forward.1} parent=99 // pred_check_branch
          %260 = sbr.rel (%p258) target = $region104
        $region103: #{svd_plus_plus_forward.1} parent=99 // pred_region
          _
        $region104: #{svd_plus_plus_forward.1} parent=99 // pred_fallthru
          _
        %s261 = sand.u32 %s51, 1
        %s262 = sand.u32 %s51, 1
        %s263 = smul.addr %s262, 32
        %s264 = scalar_lea.vmem [#allocation3], %s263
        // Predicated region
        $region105: #{svd_plus_plus_forward.1} parent=99 // pred_check
          %p265 = pneg %p64
        $region106: #{svd_plus_plus_forward.1} parent=99 // pred_check_branch
          %267 = sbr.rel (%p265) target = $region108
        $region107: #{svd_plus_plus_forward.1} parent=99 // pred_region
          _
        $region108: #{svd_plus_plus_forward.1} parent=99 // pred_fallthru
          _
        %s268 = sand.u32 %s25, 1
        %s269 = sand.u32 %s25, 1
        %s270 = smul.addr %s269, 32
        %s271 = scalar_lea.vmem [#allocation2], %s270
        %p272 = pneg %p38
        %p273 = pneg %p35
        %s274 = sand.u32 %s51, 1
        %s275 = sand.u32 %s51, 1
        %s276 = smul.addr %s275, 32
        %s277 = scalar_lea.vmem [#allocation3], %s276
        %p278 = pneg %p64
        %p279 = pneg %p61
        %p280 = scmp.lt.s32.totalorder %s17, 1
        %s281 = scalar_select %p280, %s17, 1
        %s282 = scalar_lea.vmem %s2, %s281
        %p283 = pneg %p90
        %p284 = pneg %p87
        %p285 = pneg %p116
        %p286 = pneg %p113
        %s287 = sand.u32 %s103, 1
        %s288 = scalar_lea.sflag [#allocation5], %s287
        %s289 = sand.u32 %s103, 1
        %s290 = scalar_lea.vmem [#allocation4], %s289
        %p291 = scmp.lt.s32.totalorder %s17, 1
        %s292 = scalar_select %p291, %s17, 1
        %s293 = scalar_lea.vmem %s2, %s292
        %v294 = vld [vmem:[%s257] sm:$0xff]
        %v295 = vld [vmem:[%s257 + $0x8] sm:$0xff]
        %v296 = vld [vmem:[%s257 + $0x10] sm:$0xff]
        %v297 = vld [vmem:[%s257 + $0x18] sm:$0xff]
        %v298 = vld [vmem:[%s264] sm:$0xff]
        %v299 = vld [vmem:[%s264 + $0x8] sm:$0xff]
        %v300 = vld [vmem:[%s264 + $0x10] sm:$0xff]
        %v301 = vld [vmem:[%s264 + $0x18] sm:$0xff]
        %v302 = vmul.f32 %v294, %v298
        %v303 = vmul.f32 %v295, %v299
        %v304 = vmul.f32 %v296, %v300
        %v305 = vmul.f32 %v297, %v301
        %v306 = vadd.f32 %v302, %v303
        %v307 = vadd.f32 %v306, %v304
        %v308 = vadd.f32 %v307, %v305
        %v309 = vrot.slane %v308, 4
        %v310 = vadd.f32 %v308, %v309
        %v311 = vrot.slane %v310, 2
        %v312 = vadd.f32 %v310, %v311
        %v313 = vrot.slane %v312, 1
        %v314 = vadd.f32 %v312, %v313
        %v315 = vld [vmem:[%s293] sm:$0x1]
        %v316 = vadd.f32 %v315, %v314
        %317 = vst [vmem:[%s290] sm:$0x1] %v316
        %s318 = sand.u32 %s103, 1
        %s319 = scalar_lea.sflag [#allocation5], %s318
        %s320 = sand.u32 %s103, 1
        %s321 = scalar_lea.vmem [#allocation4], %s320
        // Predicated region
        $region109: #{svd_plus_plus_forward.1} parent=99 // pred_check
          %p322 = pneg %p113
        $region110: #{svd_plus_plus_forward.1} parent=99 // pred_check_branch
          %324 = sbr.rel (%p322) target = $region112
        $region111: #{svd_plus_plus_forward.1} parent=99 // pred_region
          %s326 = ssub.s32 16, 16
          %327 = vsyncadd %s319, %s326
          %s328 = smul.addr %s17, 16
          %s329 = scalar_lea.hbm %s3, %s328
          %s331 = sshll.u32 %s321, 4
          %s332 = int_to_ptr.vmem [resolvable:$true] %s331
          %334 = dma.vmem_to_hbm [thread:$0]  %s332, 16, %s329, %s319
        $region112: #{svd_plus_plus_forward.1} parent=99 // pred_fallthru
          _
      $region100: #{svd_plus_plus_forward.1} parent=5 // pred_fallthru
        _
      %p335 = scmp.le.s32.totalorder 2, %s12
      // Predicated region
      $region113: #{svd_plus_plus_forward.1} parent=5 // pred_check
        %p336 = pneg %p335
      $region114: #{svd_plus_plus_forward.1} parent=5 // pred_check_branch
        %338 = sbr.rel (%p336) target = $region116
      $region115: #{svd_plus_plus_forward.1} parent=5 // pred_region
        %s339 = ssub.s32 %s12, 2
        // Predicated region
        $region117: #{svd_plus_plus_forward.1} parent=115 // pred_check
          %p340 = pneg %p119
        $region118: #{svd_plus_plus_forward.1} parent=115 // pred_check_branch
          %342 = sbr.rel (%p340) target = $region120
        $region119: #{svd_plus_plus_forward.1} parent=115 // pred_region
          %s343 = sand.u32 %s104, 1
          %s344 = scalar_lea.sflag [#allocation5], %s343
          %s345 = sand.u32 %s104, 1
          %s346 = scalar_lea.vmem [#allocation4], %s345
          %347 = dma.done %s344, 16
        $region120: #{svd_plus_plus_forward.1} parent=115 // pred_fallthru
          _
      $region116: #{svd_plus_plus_forward.1} parent=5 // pred_fallthru
        _
    $region6: #{svd_plus_plus_forward.1} parent=1 // loop_footer
      %s16 = sadd.s32 1, %s12
    $region7: #{svd_plus_plus_forward.1} parent=1 // loop_footer_branch
      %11 = sbr.rel target = $region3
    $region8: #{svd_plus_plus_forward.1} parent=1 // loop_exit
      _
    %348 = vsyncpa [#allocation5], 1
    %s349 = scalar_lea.sflag [#allocation5], 1
    %350 = vsyncpa %s349, 1

</llo_original>
